<compile_context>
chip_gen: v6e
topology: v6e:2x2x1
jax: 0.10.0
libtpu: 0.0.40
codegen_flags: <defaults>
</compile_context>

<pallas_src>
import functools

import jax
import jax.numpy as jnp
from jax.experimental import pallas as pl
from jax.experimental.pallas import tpu as pltpu

IN_DIM = 92
H1 = 256
H2 = 128
OUT_DIM = 64


def _round_up(n, m):
    return ((n + m - 1) // m) * m


def _mlp_kernel(x_ref, w1_ref, b1_ref, w2_ref, b2_ref, w3_ref, b3_ref, o_ref):
    # All matmuls run in bf16 on the MXU with f32 accumulation; bias + ReLU in f32,
    # intermediates immediately cast back to bf16 to keep vreg/VMEM pressure low.
    # Dropout layers are identity in eval mode.
    x = x_ref[...].astype(jnp.bfloat16)

    h1 = jnp.dot(x, w1_ref[...], preferred_element_type=jnp.float32)
    h1 = jnp.maximum(h1 + b1_ref[...], 0.0).astype(jnp.bfloat16)

    h2 = jnp.dot(h1, w2_ref[...], preferred_element_type=jnp.float32)
    h2 = jnp.maximum(h2 + b2_ref[...], 0.0).astype(jnp.bfloat16)

    out = jnp.dot(h2, w3_ref[...], preferred_element_type=jnp.float32)
    o_ref[...] = (out + b3_ref[...]).astype(o_ref.dtype)


@functools.partial(jax.jit, static_argnames=("tile_m",))
def vgg_feature_extractor(x, params, *, tile_m=4096):
    """x: [B, IN_DIM] float32 -> [B, OUT_DIM] float32. `params` from prepare_params()."""
    w1, b1, w2, b2, w3, b3 = params
    B = x.shape[0]

    # Big batch tiles (multiple of 8 sublanes) to amortize the ~600-cycle per-grid-step overhead;
    # clamp to the batch so small batches run as a single (ragged) step.
    tm = max(8, min(tile_m, _round_up(B, 8)))
    grid = (pl.cdiv(B, tm),)

    const = lambda shape: pl.BlockSpec(shape, lambda i: (0, 0))

    flops = 2 * B * (IN_DIM * H1 + H1 * H2 + H2 * OUT_DIM)
    bytes_accessed = (
        B * IN_DIM * 4                                  # x (f32, unpadded)
        + B * OUT_DIM * 4                               # out (f32, 64-wide)
        + (IN_DIM * H1 + H1 * H2 + H2 * OUT_DIM) * 2    # weights (bf16)
        + (H1 + H2 + OUT_DIM) * 4                       # biases (f32)
    )

    out = pl.pallas_call(
        _mlp_kernel,
        out_shape=jax.ShapeDtypeStruct((B, OUT_DIM), jnp.float32),
        grid_spec=pltpu.PrefetchScalarGridSpec(
            num_scalar_prefetch=0,
            grid=grid,
            in_specs=[
                # x tile: f32, last dim 92 == full array dim, so no padding needed.
                pl.BlockSpec((tm, IN_DIM), lambda i: (i, 0)),
                const((IN_DIM, H1)),   # w1 (bf16)
                const((1, H1)),        # b1 (f32)
                const((H1, H2)),       # w2 (bf16)
                const((1, H2)),        # b2 (f32)
                const((H2, OUT_DIM)),  # w3 (bf16)
                const((1, OUT_DIM)),   # b3 (f32)
            ],
            out_specs=pl.BlockSpec((tm, OUT_DIM), lambda i: (i, 0)),
        ),
        compiler_params=pltpu.CompilerParams(
            dimension_semantics=("parallel",),
        ),
        cost_estimate=pl.CostEstimate(
            flops=flops, transcendentals=0, bytes_accessed=bytes_accessed),
    )(x, w1, b1, w2, b2, w3, b3)

    return out


def init_params(key):
    """Deterministic synthetic parameters matching the PyTorch module's shapes.

    PyTorch nn.Linear stores weight as [out, in]; we store the transpose [in, out]
    so the kernel can compute x @ W directly.
    """
    ks = jax.random.split(key, 6)

    def linear(kw, kb, fan_in, fan_out):
        bound = 1.0 / jnp.sqrt(fan_in)
        w = jax.random.uniform(kw, (fan_in, fan_out), jnp.float32, -bound, bound)
        b = jax.random.uniform(kb, (1, fan_out), jnp.float32, -bound, bound)
        return w, b

    w1, b1 = linear(ks[0], ks[1], IN_DIM, H1)
    w2, b2 = linear(ks[2], ks[3], H1, H2)
    w3, b3 = linear(ks[4], ks[5], H2, OUT_DIM)
    return (w1, b1, w2, b2, w3, b3)


def prepare_params(raw):
    """Cast weights to bf16 for the MXU (biases stay f32). No shape padding needed."""
    w1, b1, w2, b2, w3, b3 = raw
    return (
        w1.astype(jnp.bfloat16),
        b1.astype(jnp.float32),
        w2.astype(jnp.bfloat16),
        b2.astype(jnp.float32),
        w3.astype(jnp.bfloat16),
        b3.astype(jnp.float32),
    )


def reference_forward(x, raw_params):
    """Pure-f32 reference of the PyTorch forward (eval mode)."""
    w1, b1, w2, b2, w3, b3 = raw_params
    h1 = jnp.maximum(x @ w1 + b1, 0.0)
    h2 = jnp.maximum(h1 @ w2 + b2, 0.0)
    return h2 @ w3 + b3


if __name__ == "__main__":
    key = jax.random.PRNGKey(0)
    k_params, k_x = jax.random.split(key)

    raw_params = init_params(k_params)
    params = prepare_params(raw_params)

    batch = 12  # deliberately not a multiple of 8 to exercise the ragged-block path
    x = jax.random.normal(k_x, (batch, IN_DIM), dtype=jnp.float32)

    ref = reference_forward(x, raw_params)

    # Default path: single grid step covering the whole (small) batch.
    out = jax.block_until_ready(vgg_feature_extractor(x, params))
    assert out.shape == (batch, OUT_DIM)
    # bf16 matmuls with f32 accumulation: allow ~1% error vs the f32 reference.
    assert jnp.allclose(out, ref, atol=5e-2, rtol=5e-2), "Pallas output mismatch vs reference"

    # Multi-step path with a ragged last block (grid=2, last block has 4 valid rows).
    out_tiled = jax.block_until_ready(vgg_feature_extractor(x, params, tile_m=8))
    assert out_tiled.shape == (batch, OUT_DIM)
    assert jnp.allclose(out_tiled, ref, atol=5e-2, rtol=5e-2), "Pallas tiled output mismatch vs reference"

    print("KERNEL_OK")
</pallas_src>

<mosaic_0001>
module attributes {stable_mosaic.version = 11 : i64} {
  func.func @_mlp_kernel(%arg0: i32, %arg1: memref<16x92xf32, #tpu.memory_space<vmem>>, %arg2: memref<92x256xbf16, #tpu.memory_space<vmem>>, %arg3: memref<1x256xf32, #tpu.memory_space<vmem>>, %arg4: memref<256x128xbf16, #tpu.memory_space<vmem>>, %arg5: memref<1x128xf32, #tpu.memory_space<vmem>>, %arg6: memref<128x64xbf16, #tpu.memory_space<vmem>>, %arg7: memref<1x64xf32, #tpu.memory_space<vmem>>, %arg8: memref<16x64xf32, #tpu.memory_space<vmem>>) attributes {dimension_semantics = [#tpu.dimension_semantics<parallel>], iteration_bounds = array<i64: 1>, scalar_prefetch = 0 : i64, scratch_operands = 0 : i64, tpu.core_type = #tpu.core_type<tc>, window_params = [{transform_indices = @transform_0, window_bounds = array<i64: 16, 92>}, {pipeline_mode = #tpu.pipeline_mode<synchronous>, transform_indices = @transform_1, window_bounds = array<i64: 92, 256>}, {pipeline_mode = #tpu.pipeline_mode<synchronous>, transform_indices = @transform_2, window_bounds = array<i64: 1, 256>}, {pipeline_mode = #tpu.pipeline_mode<synchronous>, transform_indices = @transform_3, window_bounds = array<i64: 256, 128>}, {pipeline_mode = #tpu.pipeline_mode<synchronous>, transform_indices = @transform_4, window_bounds = array<i64: 1, 128>}, {pipeline_mode = #tpu.pipeline_mode<synchronous>, transform_indices = @transform_5, window_bounds = array<i64: 128, 64>}, {pipeline_mode = #tpu.pipeline_mode<synchronous>, transform_indices = @transform_6, window_bounds = array<i64: 1, 64>}, {transform_indices = @transform_7, window_bounds = array<i64: 16, 64>}]} {
    %c0 = arith.constant 0 : index
    %c0_0 = arith.constant 0 : index
    %0 = vector.load %arg1[%c0, %c0_0] : memref<16x92xf32, #tpu.memory_space<vmem>>, vector<16x92xf32>
    %1 = arith.truncf %0 : vector<16x92xf32> to vector<16x92xbf16>
    %c0_1 = arith.constant 0 : index
    %c0_2 = arith.constant 0 : index
    %2 = vector.load %arg2[%c0_1, %c0_2] : memref<92x256xbf16, #tpu.memory_space<vmem>>, vector<92x256xbf16>
    %cst = arith.constant dense<0.000000e+00> : vector<16x256xf32>
    %3 = tpu.matmul %1, %2, %cst {dimension_numbers = #tpu.dot_dimension_numbers<[1], [0], [0], [1], [0, 0, 1, 1], [], []>} : vector<16x92xbf16>, vector<92x256xbf16>, vector<16x256xf32> -> vector<16x256xf32>
    %c0_3 = arith.constant 0 : index
    %c0_4 = arith.constant 0 : index
    %4 = vector.load %arg3[%c0_3, %c0_4] : memref<1x256xf32, #tpu.memory_space<vmem>>, vector<1x256xf32>
    %5 = vector.broadcast %4 : vector<1x256xf32> to vector<16x256xf32>
    %6 = arith.addf %3, %5 : vector<16x256xf32>
    %cst_5 = arith.constant 0.000000e+00 : f32
    %7 = vector.broadcast %cst_5 : f32 to vector<16x256xf32>
    %8 = arith.maximumf %6, %7 : vector<16x256xf32>
    %9 = arith.truncf %8 : vector<16x256xf32> to vector<16x256xbf16>
    %c0_6 = arith.constant 0 : index
    %c0_7 = arith.constant 0 : index
    %10 = vector.load %arg4[%c0_6, %c0_7] : memref<256x128xbf16, #tpu.memory_space<vmem>>, vector<256x128xbf16>
    %cst_8 = arith.constant dense<0.000000e+00> : vector<16x128xf32>
    %11 = tpu.matmul %9, %10, %cst_8 {dimension_numbers = #tpu.dot_dimension_numbers<[1], [0], [0], [1], [0, 0, 1, 1], [], []>} : vector<16x256xbf16>, vector<256x128xbf16>, vector<16x128xf32> -> vector<16x128xf32>
    %c0_9 = arith.constant 0 : index
    %c0_10 = arith.constant 0 : index
    %12 = vector.load %arg5[%c0_9, %c0_10] : memref<1x128xf32, #tpu.memory_space<vmem>>, vector<1x128xf32>
    %13 = vector.broadcast %12 : vector<1x128xf32> to vector<16x128xf32>
    %14 = arith.addf %11, %13 : vector<16x128xf32>
    %cst_11 = arith.constant 0.000000e+00 : f32
    %15 = vector.broadcast %cst_11 : f32 to vector<16x128xf32>
    %16 = arith.maximumf %14, %15 : vector<16x128xf32>
    %17 = arith.truncf %16 : vector<16x128xf32> to vector<16x128xbf16>
    %c0_12 = arith.constant 0 : index
    %c0_13 = arith.constant 0 : index
    %18 = vector.load %arg6[%c0_12, %c0_13] : memref<128x64xbf16, #tpu.memory_space<vmem>>, vector<128x64xbf16>
    %cst_14 = arith.constant dense<0.000000e+00> : vector<16x64xf32>
    %19 = tpu.matmul %17, %18, %cst_14 {dimension_numbers = #tpu.dot_dimension_numbers<[1], [0], [0], [1], [0, 0, 1, 1], [], []>} : vector<16x128xbf16>, vector<128x64xbf16>, vector<16x64xf32> -> vector<16x64xf32>
    %c0_15 = arith.constant 0 : index
    %c0_16 = arith.constant 0 : index
    %20 = vector.load %arg7[%c0_15, %c0_16] : memref<1x64xf32, #tpu.memory_space<vmem>>, vector<1x64xf32>
    %21 = vector.broadcast %20 : vector<1x64xf32> to vector<16x64xf32>
    %22 = arith.addf %19, %21 : vector<16x64xf32>
    %c0_17 = arith.constant 0 : index
    %c0_18 = arith.constant 0 : index
    %23 = vector.load %arg8[%c0_17, %c0_18] : memref<16x64xf32, #tpu.memory_space<vmem>>, vector<16x64xf32>
    tpu.vector_store %arg8[%c0_17, %c0_18], %22 {strides = array<i32>} : memref<16x64xf32, #tpu.memory_space<vmem>>, vector<16x64xf32>,
    return
  }
  func.func @transform_0(%arg0: i32) -> (i32, i32) {
    %c0_i32 = arith.constant 0 : i32
    %c0_i32_0 = arith.constant 0 : i32
    return %arg0, %c0_i32 : i32, i32
  }
  func.func @transform_1(%arg0: i32) -> (i32, i32) {
    %c0_i32 = arith.constant 0 : i32
    %c0_i32_0 = arith.constant 0 : i32
    %c0_i32_1 = arith.constant 0 : i32
    return %c0_i32, %c0_i32_0 : i32, i32
  }
  func.func @transform_2(%arg0: i32) -> (i32, i32) {
    %c0_i32 = arith.constant 0 : i32
    %c0_i32_0 = arith.constant 0 : i32
    %c0_i32_1 = arith.constant 0 : i32
    return %c0_i32, %c0_i32_0 : i32, i32
  }
  func.func @transform_3(%arg0: i32) -> (i32, i32) {
    %c0_i32 = arith.constant 0 : i32
    %c0_i32_0 = arith.constant 0 : i32
    %c0_i32_1 = arith.constant 0 : i32
    return %c0_i32, %c0_i32_0 : i32, i32
  }
  func.func @transform_4(%arg0: i32) -> (i32, i32) {
    %c0_i32 = arith.constant 0 : i32
    %c0_i32_0 = arith.constant 0 : i32
    %c0_i32_1 = arith.constant 0 : i32
    return %c0_i32, %c0_i32_0 : i32, i32
  }
  func.func @transform_5(%arg0: i32) -> (i32, i32) {
    %c0_i32 = arith.constant 0 : i32
    %c0_i32_0 = arith.constant 0 : i32
    %c0_i32_1 = arith.constant 0 : i32
    return %c0_i32, %c0_i32_0 : i32, i32
  }
  func.func @transform_6(%arg0: i32) -> (i32, i32) {
    %c0_i32 = arith.constant 0 : i32
    %c0_i32_0 = arith.constant 0 : i32
    %c0_i32_1 = arith.constant 0 : i32
    return %c0_i32, %c0_i32_0 : i32, i32
  }
  func.func @transform_7(%arg0: i32) -> (i32, i32) {
    %c0_i32 = arith.constant 0 : i32
    %c0_i32_0 = arith.constant 0 : i32
    return %arg0, %c0_i32 : i32, i32
  }
}

</mosaic_0001>

<llo_original>
// kernel: vgg_feature_extractor.1
$region0: #{vgg_feature_extractor.1}
  #allocation0 [shape = 'u32[]', space=smem, size = 0x4, offset = 0x4, fixed_abs, tag = 'smem constant byte address 0x4 - core index']
  #allocation1 [shape = 'u32[144,128]{1,0:T(1,128)}', space=vmem, size = 0x12000, scoped, tag = 'internal scratch']
  %s0 = inlined_call_operand.hbm [shape: f32[12,92], index: 0, kind: input, shape index: {}]
  %s1 = inlined_call_operand.vmem [shape: bf16[92,256], index: 1, kind: input, shape index: {}]
  %s2 = inlined_call_operand.vmem [shape: f32[1,256], index: 2, kind: input, shape index: {}]
  %s3 = inlined_call_operand.hbm [shape: bf16[256,128], index: 3, kind: input, shape index: {}]
  %s4 = inlined_call_operand.vmem [shape: f32[1,128], index: 4, kind: input, shape index: {}]
  %s5 = inlined_call_operand.vmem [shape: bf16[128,64], index: 5, kind: input, shape index: {}]
  %s6 = inlined_call_operand.vmem [shape: f32[1,64], index: 6, kind: input, shape index: {}]
  %s7 = inlined_call_operand.hbm [shape: f32[12,64], index: 7, kind: output, shape index: {}]
  %s8 = sld [smem:[#allocation0]]
  $region46: #{vgg_feature_extractor.1} parent=0
    _
  %s10 = ssub.s32 1, %s8
  %s11 = scalar_select 0, %s10, %s8
  $region1: #{vgg_feature_extractor.1} parent=0
    #allocation2 [shape = 'u8[8192]{0}', space=vmem, size = 0x2000, scoped, tag = 'input window, operand 0, single buffered']
    #allocation3 [shape = 's32[1]{0}', space=sflag, size = 0x4, scoped, tag = 'scoped memory for vgg_feature_extractor.1']
    #allocation4 [shape = 's32[1]{0}', space=sflag, size = 0x4, scoped, tag = 'scoped memory for vgg_feature_extractor.1']
    #allocation5 [shape = 'u8[65536]{0}', space=vmem, size = 0x10000, scoped, tag = 'input window, operand 3, single buffered']
    #allocation6 [shape = 's32[1]{0}', space=sflag, size = 0x4, scoped, tag = 'scoped memory for vgg_feature_extractor.1']
    #allocation7 [shape = 'u8[8192]{0}', space=vmem, size = 0x2000, scoped, tag = 'output window, operand 0, single buffered']
    %12 = vsyncpa [#allocation3], 0
    %13 = vsyncpa [#allocation6], 0
    %14 = vsyncpa [#allocation4], 0
    // Predicated region
    $region2: #{vgg_feature_extractor.1} parent=1 // pred_check
      _
    $region3: #{vgg_feature_extractor.1} parent=1 // pred_check_branch
      %16 = sbr.rel (0) target = $region5
    $region4: #{vgg_feature_extractor.1} parent=1 // pred_region
      %s18 = ssub.s32 256, 256
      %19 = vsyncadd [#allocation3], %s18
      %s20 = sshll.u32 [#allocation2], 4
      %s21 = int_to_ptr.vmem [resolvable:$true] %s20
      %26 = dma.hbm_to_vmem [thread:$0]  %s0, 256, %s21, [#allocation3], 128, 128, 8
    $region5: #{vgg_feature_extractor.1} parent=1 // pred_fallthru
      _
    // Predicated region
    $region6: #{vgg_feature_extractor.1} parent=1 // pred_check
      _
    $region7: #{vgg_feature_extractor.1} parent=1 // pred_check_branch
      %28 = sbr.rel (0) target = $region9
    $region8: #{vgg_feature_extractor.1} parent=1 // pred_region
      _
    $region9: #{vgg_feature_extractor.1} parent=1 // pred_fallthru
      _
    // Predicated region
    $region10: #{vgg_feature_extractor.1} parent=1 // pred_check
      _
    $region11: #{vgg_feature_extractor.1} parent=1 // pred_check_branch
      %30 = sbr.rel (0) target = $region13
    $region12: #{vgg_feature_extractor.1} parent=1 // pred_region
      _
    $region13: #{vgg_feature_extractor.1} parent=1 // pred_fallthru
      _
    // Predicated region
    $region14: #{vgg_feature_extractor.1} parent=1 // pred_check
      _
    $region15: #{vgg_feature_extractor.1} parent=1 // pred_check_branch
      %32 = sbr.rel (0) target = $region17
    $region16: #{vgg_feature_extractor.1} parent=1 // pred_region
      %s34 = ssub.s32 2048, 2048
      %35 = vsyncadd [#allocation6], %s34
      %s36 = sshll.u32 [#allocation5], 4
      %s37 = int_to_ptr.vmem [resolvable:$true] %s36
      %42 = dma.hbm_to_vmem [thread:$0]  %s3, 2048, %s37, [#allocation6], 64, 64, 4
    $region17: #{vgg_feature_extractor.1} parent=1 // pred_fallthru
      _
    // Predicated region
    $region18: #{vgg_feature_extractor.1} parent=1 // pred_check
      _
    $region19: #{vgg_feature_extractor.1} parent=1 // pred_check_branch
      %44 = sbr.rel (0) target = $region21
    $region20: #{vgg_feature_extractor.1} parent=1 // pred_region
      _
    $region21: #{vgg_feature_extractor.1} parent=1 // pred_fallthru
      _
    // Predicated region
    $region22: #{vgg_feature_extractor.1} parent=1 // pred_check
      _
    $region23: #{vgg_feature_extractor.1} parent=1 // pred_check_branch
      %46 = sbr.rel (0) target = $region25
    $region24: #{vgg_feature_extractor.1} parent=1 // pred_region
      _
    $region25: #{vgg_feature_extractor.1} parent=1 // pred_fallthru
      _
    // Predicated region
    $region26: #{vgg_feature_extractor.1} parent=1 // pred_check
      _
    $region27: #{vgg_feature_extractor.1} parent=1 // pred_check_branch
      %48 = sbr.rel (0) target = $region29
    $region28: #{vgg_feature_extractor.1} parent=1 // pred_region
      _
    $region29: #{vgg_feature_extractor.1} parent=1 // pred_fallthru
      _
    // Predicated region
    $region30: #{vgg_feature_extractor.1} parent=1 // pred_check
      _
    $region31: #{vgg_feature_extractor.1} parent=1 // pred_check_branch
      %50 = sbr.rel (0) target = $region33
    $region32: #{vgg_feature_extractor.1} parent=1 // pred_region
      %51 = dma.done [#allocation3], 256
    $region33: #{vgg_feature_extractor.1} parent=1 // pred_fallthru
      _
    // Predicated region
    $region34: #{vgg_feature_extractor.1} parent=1 // pred_check
      _
    $region35: #{vgg_feature_extractor.1} parent=1 // pred_check_branch
      %53 = sbr.rel (0) target = $region37
    $region36: #{vgg_feature_extractor.1} parent=1 // pred_region
      %54 = dma.done [#allocation6], 2048
    $region37: #{vgg_feature_extractor.1} parent=1 // pred_fallthru
      _
    %v56 = vld [vmem:[#allocation2] sm:$0xff]
    %v57 = vld [vmem:[#allocation2 + $0x8] sm:$0xff]
    %v58 = vpack.c.bf16 %v57, %v56
    %v59 = vld [vmem:[%s1] sm:$0xff]
    %v60 = vld [vmem:[%s1 + $0x8] sm:$0xff]
    %v61 = vld [vmem:[%s1 + $0x10] sm:$0xff]
    %v62 = vld [vmem:[%s1 + $0x18] sm:$0xff]
    %v63 = vld [vmem:[%s1 + $0x20] sm:$0xff]
    %v64 = vld [vmem:[%s1 + $0x28] sm:$0xff]
    %v65 = vld [vmem:[%s1 + $0x30] sm:$0xff]
    %v66 = vld [vmem:[%s1 + $0x38] sm:$0xff]
    %v67 = vld [vmem:[%s1 + $0x40] sm:$0xff]
    %v68 = vld [vmem:[%s1 + $0x48] sm:$0xff]
    %v69 = vld [vmem:[%s1 + $0x50] sm:$0xff]
    %v70 = vld [vmem:[%s1 + $0x58] sm:$0x33]
    %v71 = vld [vmem:[%s2] sm:$0x3]
    %v73 = vlaneseq
    %v74 = vshrl.u32 %v73, 7
    %v75 = vsub.s32 0, %v74
    %v76 = vrot.slane %v71, %v75
    %v77 = vlaneseq
    %v78 = vshrl.u32 %v77, 7
    %v79 = vsub.s32 1, %v78
    %v80 = vrot.slane %v71, %v79
    %v95 = vunpack.c.l.b16 %v59
    %v96 = vunpack.c.h.b16 %v59
    %v97 = vunpack.c.l.b16 %v60
    %v98 = vunpack.c.h.b16 %v60
    %v99 = vunpack.c.l.b16 %v61
    %v100 = vunpack.c.h.b16 %v61
    %v101 = vunpack.c.l.b16 %v62
    %v102 = vunpack.c.h.b16 %v62
    %v103 = vunpack.c.l.b16 %v63
    %v104 = vunpack.c.h.b16 %v63
    %v105 = vunpack.c.l.b16 %v64
    %v106 = vunpack.c.h.b16 %v64
    %v107 = vunpack.c.l.b16 %v65
    %v108 = vunpack.c.h.b16 %v65
    %v109 = vunpack.c.l.b16 %v66
    %v110 = vunpack.c.h.b16 %v66
    %v111 = vunpack.c.l.b16 %v67
    %v112 = vunpack.c.h.b16 %v67
    %v113 = vunpack.c.l.b16 %v68
    %v114 = vunpack.c.h.b16 %v68
    %v115 = vunpack.c.l.b16 %v69
    %v116 = vunpack.c.h.b16 %v69
    %v117 = vunpack.c.l.b16 %v70
    %v118 = vunpack.c.h.b16 %v70
    %v119 = vpack.c.b16 %v97, %v95
    %v120 = vpack.c.b16 %v98, %v96
    %v121 = vpack.c.b16 %v101, %v99
    %v122 = vpack.c.b16 %v102, %v100
    %v123 = vpack.c.b16 %v105, %v103
    %v124 = vpack.c.b16 %v106, %v104
    %v125 = vpack.c.b16 %v109, %v107
    %v126 = vpack.c.b16 %v110, %v108
    %v127 = vpack.c.b16 %v113, %v111
    %v128 = vpack.c.b16 %v114, %v112
    %v129 = vpack.c.b16 %v117, %v115
    %v130 = vpack.c.b16 %v118, %v116
    %vm141 = vcmask 752640
    %v143 = vsel %vm141, %v58, 0
    %vm145 = vcmask 1045504
    %v147 = vsel %vm145, %v129, 0
    %v150 = vsel %vm145, %v130, 0
    %152 = vmatprep.subr.bf16.mxu0 0
    %153 = vmatpush1.bf16.msra.mxu0 0
    %154 = vmatprep.subr.bf16.mxu0 0
    %155 = vmatpush1.bf16.msra.mxu0 0
    %156 = vmatprep.subr.bf16.mxu0 %v150
    %157 = vmatpush1.bf16.msra.mxu0 %v147
    %158 = vmatprep.subr.bf16.mxu0 %v128
    %159 = vmatpush1.bf16.msra.mxu0 %v127
    %160 = vmatprep.subr.bf16.mxu0 %v126
    %161 = vmatpush1.bf16.msra.mxu0 %v125
    %162 = vmatprep.subr.bf16.mxu0 %v124
    %163 = vmatpush1.bf16.msra.mxu0 %v123
    %164 = vmatprep.subr.bf16.mxu0 %v122
    %165 = vmatpush1.bf16.msra.mxu0 %v121
    %166 = vmatprep.subr.bf16.mxu0 %v120
    %167 = vmatpush1.bf16.msra.mxu0 %v119
    %168 = vmatprep.subr.bf16.mxu0 0
    %169 = vmatpush2.bf16.msra.mxu0 0
    %170 = vmatprep.subr.bf16.mxu0 0
    %171 = vmatpush2.bf16.msra.mxu0 0
    %172 = vmatprep.subr.bf16.mxu0 0
    %173 = vmatpush2.bf16.msra.mxu0 0
    %174 = vmatprep.subr.bf16.mxu0 0
    %175 = vmatpush2.bf16.msra.mxu0 0
    %176 = vmatprep.subr.bf16.mxu0 0
    %177 = vmatpush2.bf16.msra.mxu0 0
    %178 = vmatprep.subr.bf16.mxu0 0
    %179 = vmatpush2.bf16.msra.mxu0 0
    %180 = vmatprep.subr.bf16.mxu0 0
    %181 = vmatpush2.bf16.msra.mxu0 0
    %182 = vmatprep.subr.bf16.mxu0 0
    %183 = vmatpush2.bf16.msra.mxu0 0
    %184 = vmatprep.mubr.bf16.mxu0 0
    %185 = vmatmul.mubr.bf16.gmra.mxu0 %v143
    %v186 = vpop.f32.mrf.mxu0
    %v187 = vadd.f32 %v76, %v186
    %v188 = vpop.f32.mrf.mxu0
    %v189 = vadd.f32 %v80, %v188
    %v190 = vpop.f32.mrf.mxu0
    %v191 = vadd.f32 %v76, %v190
    %v192 = vpop.f32.mrf.mxu0
    %v193 = vadd.f32 %v80, %v192
    %194 = vdwg.mxu0
    %v195 = vmax.f32 %v187, 0.0
    %v196 = vmax.f32 %v189, 0.0
    %v197 = vmax.f32 %v191, 0.0
    %v198 = vmax.f32 %v193, 0.0
    %v199 = vpack.c.bf16 %v197, %v195
    %v200 = vpack.c.bf16 %v198, %v196
    %v201 = vld [vmem:[#allocation5] sm:$0xf]
    %v202 = vld [vmem:[#allocation5 + $0x4] sm:$0xf]
    %v203 = vld [vmem:[#allocation5 + $0x8] sm:$0xf]
    %v204 = vld [vmem:[#allocation5 + $0xc] sm:$0xf]
    %v205 = vld [vmem:[#allocation5 + $0x10] sm:$0xf]
    %v206 = vld [vmem:[#allocation5 + $0x14] sm:$0xf]
    %v207 = vld [vmem:[#allocation5 + $0x18] sm:$0xf]
    %v208 = vld [vmem:[#allocation5 + $0x1c] sm:$0xf]
    %v209 = vld [vmem:[#allocation5 + $0x20] sm:$0xf]
    %v210 = vld [vmem:[#allocation5 + $0x24] sm:$0xf]
    %v211 = vld [vmem:[#allocation5 + $0x28] sm:$0xf]
    %v212 = vld [vmem:[#allocation5 + $0x2c] sm:$0xf]
    %v213 = vld [vmem:[#allocation5 + $0x30] sm:$0xf]
    %v214 = vld [vmem:[#allocation5 + $0x34] sm:$0xf]
    %v215 = vld [vmem:[#allocation5 + $0x38] sm:$0xf]
    %v216 = vld [vmem:[#allocation5 + $0x3c] sm:$0xf]
    %v217 = vld [vmem:[#allocation5 + $0x40] sm:$0xf]
    %v218 = vld [vmem:[#allocation5 + $0x44] sm:$0xf]
    %v219 = vld [vmem:[#allocation5 + $0x48] sm:$0xf]
    %v220 = vld [vmem:[#allocation5 + $0x4c] sm:$0xf]
    %v221 = vld [vmem:[#allocation5 + $0x50] sm:$0xf]
    %v222 = vld [vmem:[#allocation5 + $0x54] sm:$0xf]
    %v223 = vld [vmem:[#allocation5 + $0x58] sm:$0xf]
    %v224 = vld [vmem:[#allocation5 + $0x5c] sm:$0xf]
    %v225 = vld [vmem:[#allocation5 + $0x60] sm:$0xf]
    %v226 = vld [vmem:[#allocation5 + $0x64] sm:$0xf]
    %v227 = vld [vmem:[#allocation5 + $0x68] sm:$0xf]
    %v228 = vld [vmem:[#allocation5 + $0x6c] sm:$0xf]
    %v229 = vld [vmem:[#allocation5 + $0x70] sm:$0xf]
    %v230 = vld [vmem:[#allocation5 + $0x74] sm:$0xf]
    %v231 = vld [vmem:[#allocation5 + $0x78] sm:$0xf]
    %v232 = vld [vmem:[#allocation5 + $0x7c] sm:$0xf]
    %v233 = vld [vmem:[%s4] sm:$0x1]
    %v235 = vlaneseq
    %v236 = vshrl.u32 %v235, 7
    %v237 = vsub.s32 0, %v236
    %v238 = vrot.slane %v233, %v237
    %v272 = vunpack.c.l.b16 %v201
    %v273 = vunpack.c.l.b16 %v202
    %v274 = vunpack.c.l.b16 %v203
    %v275 = vunpack.c.l.b16 %v204
    %v276 = vunpack.c.l.b16 %v205
    %v277 = vunpack.c.l.b16 %v206
    %v278 = vunpack.c.l.b16 %v207
    %v279 = vunpack.c.l.b16 %v208
    %v280 = vunpack.c.l.b16 %v209
    %v281 = vunpack.c.l.b16 %v210
    %v282 = vunpack.c.l.b16 %v211
    %v283 = vunpack.c.l.b16 %v212
    %v284 = vunpack.c.l.b16 %v213
    %v285 = vunpack.c.l.b16 %v214
    %v286 = vunpack.c.l.b16 %v215
    %v287 = vunpack.c.l.b16 %v216
    %v288 = vunpack.c.l.b16 %v217
    %v289 = vunpack.c.l.b16 %v218
    %v290 = vunpack.c.l.b16 %v219
    %v291 = vunpack.c.l.b16 %v220
    %v292 = vunpack.c.l.b16 %v221
    %v293 = vunpack.c.l.b16 %v222
    %v294 = vunpack.c.l.b16 %v223
    %v295 = vunpack.c.l.b16 %v224
    %v296 = vunpack.c.l.b16 %v225
    %v297 = vunpack.c.l.b16 %v226
    %v298 = vunpack.c.l.b16 %v227
    %v299 = vunpack.c.l.b16 %v228
    %v300 = vunpack.c.l.b16 %v229
    %v301 = vunpack.c.l.b16 %v230
    %v302 = vunpack.c.l.b16 %v231
    %v303 = vunpack.c.l.b16 %v232
    %v304 = vpack.c.b16 %v273, %v272
    %v305 = vpack.c.b16 %v275, %v274
    %v306 = vpack.c.b16 %v277, %v276
    %v307 = vpack.c.b16 %v279, %v278
    %v308 = vpack.c.b16 %v281, %v280
    %v309 = vpack.c.b16 %v283, %v282
    %v310 = vpack.c.b16 %v285, %v284
    %v311 = vpack.c.b16 %v287, %v286
    %v312 = vpack.c.b16 %v289, %v288
    %v313 = vpack.c.b16 %v291, %v290
    %v314 = vpack.c.b16 %v293, %v292
    %v315 = vpack.c.b16 %v295, %v294
    %v316 = vpack.c.b16 %v297, %v296
    %v317 = vpack.c.b16 %v299, %v298
    %v318 = vpack.c.b16 %v301, %v300
    %v319 = vpack.c.b16 %v303, %v302
    %336 = vmatprep.subr.bf16.mxu0 0
    %337 = vmatpush1.bf16.msra.mxu0 %v311
    %338 = vmatprep.subr.bf16.mxu0 0
    %339 = vmatpush1.bf16.msra.mxu0 %v310
    %340 = vmatprep.subr.bf16.mxu0 0
    %341 = vmatpush1.bf16.msra.mxu0 %v309
    %342 = vmatprep.subr.bf16.mxu0 0
    %343 = vmatpush1.bf16.msra.mxu0 %v308
    %344 = vmatprep.subr.bf16.mxu0 0
    %345 = vmatpush1.bf16.msra.mxu0 %v307
    %346 = vmatprep.subr.bf16.mxu0 0
    %347 = vmatpush1.bf16.msra.mxu0 %v306
    %348 = vmatprep.subr.bf16.mxu0 0
    %349 = vmatpush1.bf16.msra.mxu0 %v305
    %350 = vmatprep.subr.bf16.mxu0 0
    %351 = vmatpush1.bf16.msra.mxu0 %v304
    %352 = vmatprep.subr.bf16.mxu0 0
    %353 = vmatpush2.bf16.msra.mxu0 %v319
    %354 = vmatprep.subr.bf16.mxu0 0
    %355 = vmatpush2.bf16.msra.mxu0 %v318
    %356 = vmatprep.subr.bf16.mxu0 0
    %357 = vmatpush2.bf16.msra.mxu0 %v317
    %358 = vmatprep.subr.bf16.mxu0 0
    %359 = vmatpush2.bf16.msra.mxu0 %v316
    %360 = vmatprep.subr.bf16.mxu0 0
    %361 = vmatpush2.bf16.msra.mxu0 %v315
    %362 = vmatprep.subr.bf16.mxu0 0
    %363 = vmatpush2.bf16.msra.mxu0 %v314
    %364 = vmatprep.subr.bf16.mxu0 0
    %365 = vmatpush2.bf16.msra.mxu0 %v313
    %366 = vmatprep.subr.bf16.mxu0 0
    %367 = vmatpush2.bf16.msra.mxu0 %v312
    %368 = vmatprep.mubr.bf16.mxu0 %v200
    %369 = vmatmul.mubr.bf16.gmra.mxu0 %v199
    %v370 = vpop.f32.mrf.mxu0
    %v371 = vadd.f32 %v238, %v370
    %v372 = vpop.f32.mrf.mxu0
    %v373 = vpop.f32.mrf.mxu0
    %v374 = vadd.f32 %v238, %v373
    %v375 = vpop.f32.mrf.mxu0
    %376 = vdwg.mxu0
    %v377 = vmax.f32 %v371, 0.0
    %v378 = vmax.f32 %v374, 0.0
    %v379 = vpack.c.bf16 %v378, %v377
    %v380 = vld [vmem:[%s5] sm:$0xf]
    %v381 = vld [vmem:[%s5 + $0x4] sm:$0xf]
    %v382 = vld [vmem:[%s5 + $0x8] sm:$0xf]
    %v383 = vld [vmem:[%s5 + $0xc] sm:$0xf]
    %v384 = vld [vmem:[%s5 + $0x10] sm:$0xf]
    %v385 = vld [vmem:[%s5 + $0x14] sm:$0xf]
    %v386 = vld [vmem:[%s5 + $0x18] sm:$0xf]
    %v387 = vld [vmem:[%s5 + $0x1c] sm:$0xf]
    %v388 = vld [vmem:[%s5 + $0x20] sm:$0xf]
    %v389 = vld [vmem:[%s5 + $0x24] sm:$0xf]
    %v390 = vld [vmem:[%s5 + $0x28] sm:$0xf]
    %v391 = vld [vmem:[%s5 + $0x2c] sm:$0xf]
    %v392 = vld [vmem:[%s5 + $0x30] sm:$0xf]
    %v393 = vld [vmem:[%s5 + $0x34] sm:$0xf]
    %v394 = vld [vmem:[%s5 + $0x38] sm:$0xf]
    %v395 = vld [vmem:[%s5 + $0x3c] sm:$0xf]
    %v396 = vld [vmem:[%s6] sm:$0x1]
    %v398 = vlaneseq
    %v399 = vshrl.u32 %v398, 7
    %v400 = vsub.s32 0, %v399
    %v401 = vrot.slane %v396, %v400
    %v419 = vunpack.c.l.b16 %v380
    %v420 = vunpack.c.l.b16 %v381
    %v421 = vunpack.c.l.b16 %v382
    %v422 = vunpack.c.l.b16 %v383
    %v423 = vunpack.c.l.b16 %v384
    %v424 = vunpack.c.l.b16 %v385
    %v425 = vunpack.c.l.b16 %v386
    %v426 = vunpack.c.l.b16 %v387
    %v427 = vunpack.c.l.b16 %v388
    %v428 = vunpack.c.l.b16 %v389
    %v429 = vunpack.c.l.b16 %v390
    %v430 = vunpack.c.l.b16 %v391
    %v431 = vunpack.c.l.b16 %v392
    %v432 = vunpack.c.l.b16 %v393
    %v433 = vunpack.c.l.b16 %v394
    %v434 = vunpack.c.l.b16 %v395
    %v435 = vpack.c.b16 %v420, %v419
    %v436 = vpack.c.b16 %v422, %v421
    %v437 = vpack.c.b16 %v424, %v423
    %v438 = vpack.c.b16 %v426, %v425
    %v439 = vpack.c.b16 %v428, %v427
    %v440 = vpack.c.b16 %v430, %v429
    %v441 = vpack.c.b16 %v432, %v431
    %v442 = vpack.c.b16 %v434, %v433
    %451 = vmatprep.subr.bf16.mxu0 0
    %452 = vmatpush1.bf16.msra.mxu0 %v442
    %453 = vmatprep.subr.bf16.mxu0 0
    %454 = vmatpush1.bf16.msra.mxu0 %v441
    %455 = vmatprep.subr.bf16.mxu0 0
    %456 = vmatpush1.bf16.msra.mxu0 %v440
    %457 = vmatprep.subr.bf16.mxu0 0
    %458 = vmatpush1.bf16.msra.mxu0 %v439
    %459 = vmatprep.subr.bf16.mxu0 0
    %460 = vmatpush1.bf16.msra.mxu0 %v438
    %461 = vmatprep.subr.bf16.mxu0 0
    %462 = vmatpush1.bf16.msra.mxu0 %v437
    %463 = vmatprep.subr.bf16.mxu0 0
    %464 = vmatpush1.bf16.msra.mxu0 %v436
    %465 = vmatprep.subr.bf16.mxu0 0
    %466 = vmatpush1.bf16.msra.mxu0 %v435
    %467 = vmatprep.subr.bf16.mxu0 0
    %468 = vmatpush2.bf16.msra.mxu0 0
    %469 = vmatprep.subr.bf16.mxu0 0
    %470 = vmatpush2.bf16.msra.mxu0 0
    %471 = vmatprep.subr.bf16.mxu0 0
    %472 = vmatpush2.bf16.msra.mxu0 0
    %473 = vmatprep.subr.bf16.mxu0 0
    %474 = vmatpush2.bf16.msra.mxu0 0
    %475 = vmatprep.subr.bf16.mxu0 0
    %476 = vmatpush2.bf16.msra.mxu0 0
    %477 = vmatprep.subr.bf16.mxu0 0
    %478 = vmatpush2.bf16.msra.mxu0 0
    %479 = vmatprep.subr.bf16.mxu0 0
    %480 = vmatpush2.bf16.msra.mxu0 0
    %481 = vmatprep.subr.bf16.mxu0 0
    %482 = vmatpush2.bf16.msra.mxu0 0
    %483 = vmatprep.mubr.bf16.mxu0 0
    %484 = vmatmul.mubr.bf16.gmra.mxu0 %v379
    %v485 = vpop.f32.mrf.mxu0
    %v486 = vadd.f32 %v401, %v485
    %v487 = vpop.f32.mrf.mxu0
    %v488 = vpop.f32.mrf.mxu0
    %v489 = vadd.f32 %v401, %v488
    %v490 = vpop.f32.mrf.mxu0
    %491 = vdwg.mxu0
    %vm492 = vcmask 523264
    %493 = vst.msk [vmem:[#allocation7] sm:$0xff] %vm492, %v486
    %494 = vst.msk [vmem:[#allocation7 + $0x8] sm:$0xff] %vm492, %v489
    // Predicated region
    $region38: #{vgg_feature_extractor.1} parent=1 // pred_check
      _
    $region39: #{vgg_feature_extractor.1} parent=1 // pred_check_branch
      %496 = sbr.rel (0) target = $region41
    $region40: #{vgg_feature_extractor.1} parent=1 // pred_region
      %s498 = ssub.s32 256, 256
      %499 = vsyncadd [#allocation4], %s498
      %s500 = sshll.u32 [#allocation7], 4
      %s501 = int_to_ptr.vmem [resolvable:$true] %s500
      %506 = dma.vmem_to_hbm [thread:$0]  %s501, 256, %s7, [#allocation4], 128, 128, 8
    $region41: #{vgg_feature_extractor.1} parent=1 // pred_fallthru
      _
    // Predicated region
    $region42: #{vgg_feature_extractor.1} parent=1 // pred_check
      _
    $region43: #{vgg_feature_extractor.1} parent=1 // pred_check_branch
      %508 = sbr.rel (0) target = $region45
    $region44: #{vgg_feature_extractor.1} parent=1 // pred_region
      %509 = dma.done [#allocation4], 256
    $region45: #{vgg_feature_extractor.1} parent=1 // pred_fallthru
      _
    %510 = vsyncpa [#allocation3], 1
    %511 = vsyncpa [#allocation6], 1
    %512 = vsyncpa [#allocation4], 1

</llo_original>
